<compile_context>
chip_gen: v6e
topology: v6e:2x2x1
jax: 0.10.0
libtpu: 0.0.40
codegen_flags: <defaults>
</compile_context>

<pallas_src>
import math
import jax
import jax.numpy as jnp
from jax.experimental import pallas as pl
from jax.experimental.pallas import tpu as pltpu

FILTER_WINDOWS = (3, 4, 5)
MAX_WINDOW = max(FILTER_WINDOWS)
LANE = 128


def _round_up(x, m):
    return ((x + m - 1) // m) * m


# ----------------------------------------------------------------------------- kernel
def cnn_classifier_kernel(emb_ref, w_ref, b_ref, mask_ref, fcw_ref, fcb_ref, out_ref):
    TB, S, Ep = emb_ref.shape
    Cp = w_ref.shape[-1]
    TAIL = mask_ref.shape[0]
    N = TB * S

    # ---- fused im2col LHS: row (b, t) = [emb[b,t], emb[b,t+1], ..., emb[b,t+4]] -------
    # Shifts run over the flattened (TB*S) axis; rows that spill past a sequence (into
    # the next batch row or the appended zero tail) only ever land on time positions the
    # tail mask removes, because a window-F channel has zero weights for taps f >= F.
    emb_bf = emb_ref[...].reshape(N, Ep)                         # bf16, layout-preserving
    emb32 = emb_bf.astype(jnp.float32)
    # 8 sublane-aligned zero rows so every shifted view is a plain static slice.
    emb32 = jnp.concatenate([emb32, jnp.zeros((8, Ep), jnp.float32)], axis=0)
    # TODO(synk): pltpu.roll on the packed bf16 tile would drop the f32 staging copies
    # once unaligned packed-sublane rotates are confirmed supported by the lowering.
    parts = [emb_bf]
    for f in range(1, MAX_WINDOW):
        parts.append(emb32[f:f + N, :].astype(jnp.bfloat16))     # shifted[i] = emb[i + f]
    lhs = jnp.concatenate(parts, axis=-1)                        # (N, 5*Ep) bf16, 128-aligned

    # ---- all three convolutions as ONE MXU matmul (f32 accumulation) ------------------
    conv = jnp.dot(lhs, w_ref[...], preferred_element_type=jnp.float32)   # (N, Cp)
    conv = conv.reshape(TB, S, Cp)

    # ---- max-pool over time; only the aligned TAIL rows need the validity mask --------
    s_head = S - TAIL
    pooled = jnp.max(conv[:, s_head:, :] + mask_ref[...], axis=1)         # (TB, Cp)
    if s_head > 0:
        pooled = jnp.maximum(pooled, jnp.max(conv[:, :s_head, :], axis=1))

    # Conv bias + ReLU after the pool (monotone => identical to relu-then-pool); the
    # module's second ReLU after the concat is a no-op on already-nonnegative values.
    feat = jnp.maximum(pooled + b_ref[...], 0.0)

    out = jnp.dot(feat.astype(jnp.bfloat16), fcw_ref[...],
                  preferred_element_type=jnp.float32) + fcb_ref[...]
    out_ref[...] = out.astype(out_ref.dtype)                     # lane-dense (TB, 128) store


# ------------------------------------------------------------------------ param setup
def init_params(key, vocab_size, embedding_dim, feature_maps, class_number):
    E, C = embedding_dim, feature_maps
    ks = jax.random.split(key, 10)
    return {
        "embedding": 0.1 * jax.random.normal(ks[0], (vocab_size + 2, E), jnp.float32),
        "w3": (1.0 / math.sqrt(3 * E)) * jax.random.normal(ks[1], (3, E, C), jnp.float32),
        "b3": 0.01 * jax.random.normal(ks[2], (1, C), jnp.float32),
        "w4": (1.0 / math.sqrt(4 * E)) * jax.random.normal(ks[3], (4, E, C), jnp.float32),
        "b4": 0.01 * jax.random.normal(ks[4], (1, C), jnp.float32),
        "w5": (1.0 / math.sqrt(5 * E)) * jax.random.normal(ks[5], (5, E, C), jnp.float32),
        "b5": 0.01 * jax.random.normal(ks[6], (1, C), jnp.float32),
        "fc_w": (1.0 / math.sqrt(3 * C)) * jax.random.normal(ks[7], (3 * C, class_number), jnp.float32),
        "fc_b": 0.01 * jax.random.normal(ks[8], (1, class_number), jnp.float32),
    }


def prepare_fused_params(params):
    """One-time fuse + pad of the per-window conv / fc params into lane-dense tensors,
    laid out as the (5*Ep, Cp) RHS of the im2col matmul."""
    E = params["w3"].shape[1]
    C = params["w3"].shape[2]
    Ep = _round_up(E, LANE)

    ws, bs = [], []
    for F in FILTER_WINDOWS:
        w = params[f"w{F}"]                                           # (F, E, C)
        ws.append(jnp.pad(w, ((0, MAX_WINDOW - F), (0, 0), (0, 0))))  # zero the extra taps
        bs.append(params[f"b{F}"])
    w_all = jnp.concatenate(ws, axis=2)                               # (5, E, 3C)
    b_all = jnp.concatenate(bs, axis=1)                               # (1, 3C)

    c3 = 3 * C
    Cp = _round_up(c3, LANE)
    w_all = jnp.pad(w_all, ((0, 0), (0, Ep - E), (0, Cp - c3)))       # (5, Ep, Cp)
    w_all = w_all.reshape(MAX_WINDOW * Ep, Cp).astype(jnp.bfloat16)   # im2col RHS
    b_all = jnp.pad(b_all, ((0, 0), (0, Cp - c3))).astype(jnp.float32)

    ncls = params["fc_w"].shape[1]
    Np = _round_up(ncls, LANE)
    fc_w = jnp.pad(params["fc_w"], ((0, Cp - c3), (0, Np - ncls))).astype(jnp.bfloat16)
    fc_b = jnp.pad(params["fc_b"], ((0, 0), (0, Np - ncls))).astype(jnp.float32)

    emb_tab = jnp.pad(params["embedding"], ((0, 0), (0, Ep - E))).astype(jnp.bfloat16)

    return dict(embedding=emb_tab, w_all=w_all, b_all=b_all, fc_w=fc_w, fc_b=fc_b,
                E=E, Ep=Ep, C=C, Cp=Cp, ncls=ncls, Np=Np)


def _tail_mask(s_valid, s_pad, tail, C, Cp):
    """(tail, Cp) additive mask for time rows s_pad-tail .. s_pad-1: 0 where the row is a
    valid conv output for that channel's window, -1e30 otherwise."""
    t = (s_pad - tail) + jnp.arange(tail, dtype=jnp.int32)[:, None]   # (tail, 1)
    valid = [jnp.full((C,), s_valid - F + 1, jnp.int32) for F in FILTER_WINDOWS]
    valid.append(jnp.full((Cp - len(FILTER_WINDOWS) * C,), s_pad, jnp.int32))  # pad lanes
    valid = jnp.concatenate(valid)[None, :]                           # (1, Cp)
    return jnp.where(t < valid, 0.0, -1e30).astype(jnp.float32)


def _vmem_capacity_bytes():
    try:
        info = pltpu.get_tpu_info()
        cap = getattr(info, "vmem_capacity_bytes", None)
        if cap:
            return int(cap)
    except Exception:
        pass
    return 64 * 1024 * 1024        # conservative: v7x per-TensorCore VMEM


def _pick_batch_tile(B, S, Ep, Cp, Np, vmem_limit):
    # Per-batch-row VMEM (bytes) of the im2col kernel:
    #   double-buffered bf16 emb input tile               2 * S*Ep*2
    #   f32 shift staging (emb32 + one live shifted part) 2 * S*Ep*4
    #   bf16 shifted parts + fused (S, 5*Ep) LHS          (2*MAX_WINDOW - 1) * S*Ep*2
    #   f32 conv output + pooling temporaries             2 * S*Cp*4
    per_row = S * ((4 + 8 + 2 * (2 * MAX_WINDOW - 1)) * Ep + 8 * Cp)
    resident = 2 * (MAX_WINDOW * Ep * Cp + Cp * Np) * 2 + (1 << 20)   # weights + slack
    budget = max(vmem_limit // 2 - resident, 8 * per_row)
    tb = budget // per_row
    tb = max(8, min(tb, 1024, _round_up(B, 8)))
    half = ((_round_up(B, 8) // 2) // 8) * 8      # keep >=2 grid steps when batch allows
    if half >= 8:
        tb = min(tb, half)
    return (tb // 8) * 8


# ---------------------------------------------------------------------------- wrapper
def cnn_classifier_forward(tokens, fused):
    if tokens.shape[1] <= MAX_WINDOW:
        # Mirror the module's F.pad; pad id 0 indexes embedding row 0, exactly as
        # F.pad + nn.Embedding (no padding_idx) do in the PyTorch model.
        tokens = jnp.pad(
            tokens, ((0, 0), (1, math.ceil((MAX_WINDOW - tokens.shape[1]) / 2))))
    s_valid = tokens.shape[1]

    # TODO(synk): the embedding gather stays in XLA outside the kernel; fusing it via
    # PrefetchScalarGridSpec + row-gather DMA would remove one HBM round trip of (B,S,Ep).
    emb = fused["embedding"][tokens]                                  # (B, s_valid, Ep) bf16

    B = emb.shape[0]
    Ep, C, Cp = fused["Ep"], fused["C"], fused["Cp"]
    ncls, Np = fused["ncls"], fused["Np"]

    S = max(16, _round_up(s_valid, 16))                               # bf16 (16,128) tiles
    if S != s_valid:
        emb = jnp.pad(emb, ((0, 0), (0, S - s_valid), (0, 0)))        # zero rows, masked out

    TAIL = min(S, _round_up(S - s_valid + MAX_WINDOW - 1, 8))
    mask = _tail_mask(s_valid, S, TAIL, C, Cp)

    vmem_limit = min((_vmem_capacity_bytes() * 3) // 4, 96 * 1024 * 1024)
    TB = _pick_batch_tile(B, S, Ep, Cp, Np, vmem_limit)
    Bp = _round_up(B, TB)
    if Bp != B:
        emb = jnp.pad(emb, ((0, Bp - B), (0, 0), (0, 0)))

    out = pl.pallas_call(
        cnn_classifier_kernel,
        out_shape=jax.ShapeDtypeStruct((Bp, Np), jnp.float32),
        grid_spec=pltpu.PrefetchScalarGridSpec(
            num_scalar_prefetch=0,
            grid=(Bp // TB,),
            in_specs=[
                pl.BlockSpec((TB, S, Ep), lambda i: (i, 0, 0)),            # batch-tiled acts
                pl.BlockSpec(fused["w_all"].shape, lambda i: (0, 0)),      # resident weights
                pl.BlockSpec(fused["b_all"].shape, lambda i: (0, 0)),
                pl.BlockSpec(mask.shape, lambda i: (0, 0)),
                pl.BlockSpec(fused["fc_w"].shape, lambda i: (0, 0)),
                pl.BlockSpec(fused["fc_b"].shape, lambda i: (0, 0)),
            ],
            out_specs=pl.BlockSpec((TB, Np), lambda i: (i, 0)),
        ),
        compiler_params=pltpu.CompilerParams(
            dimension_semantics=("parallel",),          # batch axis -> both TCs on v7x
            vmem_limit_bytes=int(vmem_limit),           # 96 MiB on 128-MiB parts, 48 MiB on v7x
        ),
    )(emb, fused["w_all"], fused["b_all"], mask, fused["fc_w"], fused["fc_b"])
    return out[:B, :ncls]


# -------------------------------------------------------------------------- reference
def _reference_forward(tokens, params):
    # Plain-JAX reference of the same eval-mode forward with matching bf16 rounding.
    if tokens.shape[1] <= MAX_WINDOW:
        tokens = jnp.pad(tokens, ((0, 0), (1, math.ceil((MAX_WINDOW - tokens.shape[1]) / 2))))
    emb = params["embedding"].astype(jnp.bfloat16)[tokens].astype(jnp.float32)
    B, S, E = emb.shape
    pooled = []
    for F in FILTER_WINDOWS:
        w = params[f"w{F}"].astype(jnp.bfloat16).astype(jnp.float32)
        L = S - F + 1
        acc = jnp.zeros((B, L, w.shape[-1]), jnp.float32)
        for f in range(F):
            acc = acc + jnp.einsum("ble,ec->blc", emb[:, f:f + L, :], w[f])
        acc = jax.nn.relu(acc + params[f"b{F}"])
        pooled.append(jnp.max(acc, axis=1))
    feat = jax.nn.relu(jnp.concatenate(pooled, axis=1))
    feat = feat.astype(jnp.bfloat16).astype(jnp.float32)
    fc_w = params["fc_w"].astype(jnp.bfloat16).astype(jnp.float32)
    return feat @ fc_w + params["fc_b"]


if __name__ == "__main__":
    # Small shapes consistent with the module's forward.
    batch, seq_len = 2, 8
    vocab_size, embedding_dim = 20, 32
    feature_maps, class_number = 16, 4

    key = jax.random.PRNGKey(0)
    k_tok, k_par = jax.random.split(key)
    tokens = jax.random.randint(k_tok, (batch, seq_len), 0, vocab_size + 2, dtype=jnp.int32)
    params = init_params(k_par, vocab_size, embedding_dim, feature_maps, class_number)
    fused = prepare_fused_params(params)

    out = cnn_classifier_forward(tokens, fused)
    out = jax.block_until_ready(out)

    ref = _reference_forward(tokens, params)
    assert out.shape == (batch, class_number)
    assert jnp.allclose(out, ref, atol=2e-3, rtol=2e-3), float(jnp.max(jnp.abs(out - ref)))

    print("KERNEL_OK")
</pallas_src>

<mosaic_0001>
module attributes {stable_mosaic.version = 11 : i64} {
  func.func @cnn_classifier_kernel(%arg0: i32, %arg1: memref<8x16x128xbf16, #tpu.memory_space<vmem>>, %arg2: memref<640x128xbf16, #tpu.memory_space<vmem>>, %arg3: memref<1x128xf32, #tpu.memory_space<vmem>>, %arg4: memref<16x128xf32, #tpu.memory_space<vmem>>, %arg5: memref<128x128xbf16, #tpu.memory_space<vmem>>, %arg6: memref<1x128xf32, #tpu.memory_space<vmem>>, %arg7: memref<8x128xf32, #tpu.memory_space<vmem>>) attributes {dimension_semantics = [#tpu.dimension_semantics<parallel>], iteration_bounds = array<i64: 1>, scalar_prefetch = 0 : i64, scratch_operands = 0 : i64, tpu.core_type = #tpu.core_type<tc>, window_params = [{transform_indices = @transform_0, window_bounds = array<i64: 8, 16, 128>}, {pipeline_mode = #tpu.pipeline_mode<synchronous>, transform_indices = @transform_1, window_bounds = array<i64: 640, 128>}, {pipeline_mode = #tpu.pipeline_mode<synchronous>, transform_indices = @transform_2, window_bounds = array<i64: 1, 128>}, {pipeline_mode = #tpu.pipeline_mode<synchronous>, transform_indices = @transform_3, window_bounds = array<i64: 16, 128>}, {pipeline_mode = #tpu.pipeline_mode<synchronous>, transform_indices = @transform_4, window_bounds = array<i64: 128, 128>}, {pipeline_mode = #tpu.pipeline_mode<synchronous>, transform_indices = @transform_5, window_bounds = array<i64: 1, 128>}, {transform_indices = @transform_6, window_bounds = array<i64: 8, 128>}]} {
    %c0 = arith.constant 0 : index
    %c0_0 = arith.constant 0 : index
    %c0_1 = arith.constant 0 : index
    %0 = vector.load %arg1[%c0, %c0_0, %c0_1] : memref<8x16x128xbf16, #tpu.memory_space<vmem>>, vector<8x16x128xbf16>
    %1 = vector.shape_cast %0 : vector<8x16x128xbf16> to vector<128x128xbf16>
    %2 = arith.extf %1 : vector<128x128xbf16> to vector<128x128xf32>
    %cst = arith.constant 0.000000e+00 : f32
    %3 = vector.broadcast %cst : f32 to vector<8x128xf32>
    %4 = tpu.concatenate %2, %3 in 0 : vector<128x128xf32>, vector<8x128xf32> -> vector<136x128xf32>
    %5 = vector.extract_strided_slice %4 {offsets = [1, 0], sizes = [128, 128], strides = [1, 1]} : vector<136x128xf32> to vector<128x128xf32>
    %6 = arith.truncf %5 : vector<128x128xf32> to vector<128x128xbf16>
    %7 = vector.extract_strided_slice %4 {offsets = [2, 0], sizes = [128, 128], strides = [1, 1]} : vector<136x128xf32> to vector<128x128xf32>
    %8 = arith.truncf %7 : vector<128x128xf32> to vector<128x128xbf16>
    %9 = vector.extract_strided_slice %4 {offsets = [3, 0], sizes = [128, 128], strides = [1, 1]} : vector<136x128xf32> to vector<128x128xf32>
    %10 = arith.truncf %9 : vector<128x128xf32> to vector<128x128xbf16>
    %11 = vector.extract_strided_slice %4 {offsets = [4, 0], sizes = [128, 128], strides = [1, 1]} : vector<136x128xf32> to vector<128x128xf32>
    %12 = arith.truncf %11 : vector<128x128xf32> to vector<128x128xbf16>
    %13 = tpu.concatenate %1, %6, %8, %10, %12 in 1 : vector<128x128xbf16>, vector<128x128xbf16>, vector<128x128xbf16>, vector<128x128xbf16>, vector<128x128xbf16> -> vector<128x640xbf16>
    %c0_2 = arith.constant 0 : index
    %c0_3 = arith.constant 0 : index
    %14 = vector.load %arg2[%c0_2, %c0_3] : memref<640x128xbf16, #tpu.memory_space<vmem>>, vector<640x128xbf16>
    %cst_4 = arith.constant dense<0.000000e+00> : vector<128x128xf32>
    %15 = tpu.matmul %13, %14, %cst_4 {dimension_numbers = #tpu.dot_dimension_numbers<[1], [0], [0], [1], [0, 0, 1, 1], [], []>} : vector<128x640xbf16>, vector<640x128xbf16>, vector<128x128xf32> -> vector<128x128xf32>
    %16 = vector.shape_cast %15 : vector<128x128xf32> to vector<8x16x128xf32>
    %c0_5 = arith.constant 0 : index
    %c0_6 = arith.constant 0 : index
    %17 = vector.load %arg4[%c0_5, %c0_6] : memref<16x128xf32, #tpu.memory_space<vmem>>, vector<16x128xf32>
    %18 = vector.shape_cast %17 : vector<16x128xf32> to vector<1x16x128xf32>
    %19 = vector.broadcast %18 : vector<1x16x128xf32> to vector<8x16x128xf32>
    %20 = arith.addf %16, %19 : vector<8x16x128xf32>
    %cst_7 = arith.constant dense<0xFF800000> : vector<8x128xf32>
    %21 = vector.multi_reduction <maximumf>, %20, %cst_7 [1] : vector<8x16x128xf32> to vector<8x128xf32>
    %c0_8 = arith.constant 0 : index
    %c0_9 = arith.constant 0 : index
    %22 = vector.load %arg3[%c0_8, %c0_9] : memref<1x128xf32, #tpu.memory_space<vmem>>, vector<1x128xf32>
    %23 = vector.broadcast %22 : vector<1x128xf32> to vector<8x128xf32>
    %24 = arith.addf %21, %23 : vector<8x128xf32>
    %cst_10 = arith.constant 0.000000e+00 : f32
    %25 = vector.broadcast %cst_10 : f32 to vector<8x128xf32>
    %26 = arith.maximumf %24, %25 : vector<8x128xf32>
    %27 = arith.truncf %26 : vector<8x128xf32> to vector<8x128xbf16>
    %c0_11 = arith.constant 0 : index
    %c0_12 = arith.constant 0 : index
    %28 = vector.load %arg5[%c0_11, %c0_12] : memref<128x128xbf16, #tpu.memory_space<vmem>>, vector<128x128xbf16>
    %cst_13 = arith.constant dense<0.000000e+00> : vector<8x128xf32>
    %29 = tpu.matmul %27, %28, %cst_13 {dimension_numbers = #tpu.dot_dimension_numbers<[1], [0], [0], [1], [0, 0, 1, 1], [], []>} : vector<8x128xbf16>, vector<128x128xbf16>, vector<8x128xf32> -> vector<8x128xf32>
    %c0_14 = arith.constant 0 : index
    %c0_15 = arith.constant 0 : index
    %30 = vector.load %arg6[%c0_14, %c0_15] : memref<1x128xf32, #tpu.memory_space<vmem>>, vector<1x128xf32>
    %31 = vector.broadcast %30 : vector<1x128xf32> to vector<8x128xf32>
    %32 = arith.addf %29, %31 : vector<8x128xf32>
    %c0_16 = arith.constant 0 : index
    %c0_17 = arith.constant 0 : index
    %33 = vector.load %arg7[%c0_16, %c0_17] : memref<8x128xf32, #tpu.memory_space<vmem>>, vector<8x128xf32>
    tpu.vector_store %arg7[%c0_16, %c0_17], %32 {strides = array<i32>} : memref<8x128xf32, #tpu.memory_space<vmem>>, vector<8x128xf32>,
    return
  }
  func.func @transform_0(%arg0: i32) -> (i32, i32, i32) {
    %c0_i32 = arith.constant 0 : i32
    %c0_i32_0 = arith.constant 0 : i32
    %c0_i32_1 = arith.constant 0 : i32
    return %arg0, %c0_i32, %c0_i32_0 : i32, i32, i32
  }
  func.func @transform_1(%arg0: i32) -> (i32, i32) {
    %c0_i32 = arith.constant 0 : i32
    %c0_i32_0 = arith.constant 0 : i32
    %c0_i32_1 = arith.constant 0 : i32
    return %c0_i32, %c0_i32_0 : i32, i32
  }
  func.func @transform_2(%arg0: i32) -> (i32, i32) {
    %c0_i32 = arith.constant 0 : i32
    %c0_i32_0 = arith.constant 0 : i32
    %c0_i32_1 = arith.constant 0 : i32
    return %c0_i32, %c0_i32_0 : i32, i32
  }
  func.func @transform_3(%arg0: i32) -> (i32, i32) {
    %c0_i32 = arith.constant 0 : i32
    %c0_i32_0 = arith.constant 0 : i32
    %c0_i32_1 = arith.constant 0 : i32
    return %c0_i32, %c0_i32_0 : i32, i32
  }
  func.func @transform_4(%arg0: i32) -> (i32, i32) {
    %c0_i32 = arith.constant 0 : i32
    %c0_i32_0 = arith.constant 0 : i32
    %c0_i32_1 = arith.constant 0 : i32
    return %c0_i32, %c0_i32_0 : i32, i32
  }
  func.func @transform_5(%arg0: i32) -> (i32, i32) {
    %c0_i32 = arith.constant 0 : i32
    %c0_i32_0 = arith.constant 0 : i32
    %c0_i32_1 = arith.constant 0 : i32
    return %c0_i32, %c0_i32_0 : i32, i32
  }
  func.func @transform_6(%arg0: i32) -> (i32, i32) {
    %c0_i32 = arith.constant 0 : i32
    %c0_i32_0 = arith.constant 0 : i32
    return %arg0, %c0_i32 : i32, i32
  }
}

</mosaic_0001>

<llo_original>
// kernel: tpu_custom_call.1
$region0: #{tpu_custom_call.1}
  #allocation0 [shape = 'u32[]', space=smem, size = 0x4, offset = 0x4, fixed_abs, tag = 'smem constant byte address 0x4 - core index']
  #allocation1 [shape = 'u32[144,128]{1,0:T(1,128)}', space=vmem, size = 0x12000, scoped, tag = 'internal scratch']
  %s0 = inlined_call_operand.hbm [shape: bf16[8,16,128], index: 0, kind: input, shape index: {}]
  %s1 = inlined_call_operand.hbm [shape: bf16[640,128], index: 1, kind: input, shape index: {}]
  %s2 = inlined_call_operand.vmem [shape: f32[1,128], index: 2, kind: input, shape index: {}]
  %s3 = inlined_call_operand.hbm [shape: f32[16,128], index: 3, kind: input, shape index: {}]
  %s4 = inlined_call_operand.hbm [shape: bf16[128,128], index: 4, kind: input, shape index: {}]
  %s5 = inlined_call_operand.vmem [shape: f32[1,128], index: 5, kind: input, shape index: {}]
  %s6 = inlined_call_operand.hbm [shape: f32[8,128], index: 6, kind: output, shape index: {}]
  %s7 = sld [smem:[#allocation0]]
  $region50: #{tpu_custom_call.1} parent=0
    _
  %s9 = ssub.s32 1, %s7
  %s10 = scalar_select 0, %s9, %s7
  $region1: #{tpu_custom_call.1} parent=0
    #allocation2 [shape = 'u8[32768]{0}', space=vmem, size = 0x8000, scoped, tag = 'input window, operand 0, single buffered']
    #allocation3 [shape = 's32[1]{0}', space=sflag, size = 0x4, scoped, tag = 'scoped memory for tpu_custom_call.1']
    #allocation4 [shape = 's32[1]{0}', space=sflag, size = 0x4, scoped, tag = 'scoped memory for tpu_custom_call.1']
    #allocation5 [shape = 'u8[163840]{0}', space=vmem, size = 0x28000, scoped, tag = 'input window, operand 1, single buffered']
    #allocation6 [shape = 's32[1]{0}', space=sflag, size = 0x4, scoped, tag = 'scoped memory for tpu_custom_call.1']
    #allocation7 [shape = 'u8[8192]{0}', space=vmem, size = 0x2000, scoped, tag = 'input window, operand 3, single buffered']
    #allocation8 [shape = 'u8[32768]{0}', space=vmem, size = 0x8000, scoped, tag = 'input window, operand 4, single buffered']
    #allocation9 [shape = 's32[1]{0}', space=sflag, size = 0x4, scoped, tag = 'scoped memory for tpu_custom_call.1']
    #allocation10 [shape = 'u8[4096]{0}', space=vmem, size = 0x1000, scoped, tag = 'output window, operand 0, single buffered']
    %11 = vsyncpa [#allocation3], 0
    %12 = vsyncpa [#allocation6], 0
    %13 = vsyncpa [#allocation9], 0
    %14 = vsyncpa [#allocation4], 0
    // Predicated region
    $region2: #{tpu_custom_call.1} parent=1 // pred_check
      _
    $region3: #{tpu_custom_call.1} parent=1 // pred_check_branch
      %16 = sbr.rel (0) target = $region5
    $region4: #{tpu_custom_call.1} parent=1 // pred_region
      %s18 = ssub.s32 1024, 1024
      %19 = vsyncadd [#allocation3], %s18
      %s20 = sshll.u32 [#allocation2], 4
      %s21 = int_to_ptr.vmem [resolvable:$true] %s20
      %26 = dma.hbm_to_vmem [thread:$0]  %s0, 1024, %s21, [#allocation3], 64, 64, 4
    $region5: #{tpu_custom_call.1} parent=1 // pred_fallthru
      _
    // Predicated region
    $region6: #{tpu_custom_call.1} parent=1 // pred_check
      _
    $region7: #{tpu_custom_call.1} parent=1 // pred_check_branch
      %28 = sbr.rel (0) target = $region9
    $region8: #{tpu_custom_call.1} parent=1 // pred_region
      %s30 = ssub.s32 5120, 5120
      %31 = vsyncadd [#allocation6], %s30
      %s32 = sshll.u32 [#allocation5], 4
      %s33 = int_to_ptr.vmem [resolvable:$true] %s32
      %38 = dma.hbm_to_vmem [thread:$0]  %s1, 5120, %s33, [#allocation6], 64, 64, 4
    $region9: #{tpu_custom_call.1} parent=1 // pred_fallthru
      _
    // Predicated region
    $region10: #{tpu_custom_call.1} parent=1 // pred_check
      _
    $region11: #{tpu_custom_call.1} parent=1 // pred_check_branch
      %40 = sbr.rel (0) target = $region13
    $region12: #{tpu_custom_call.1} parent=1 // pred_region
      _
    $region13: #{tpu_custom_call.1} parent=1 // pred_fallthru
      _
    // Predicated region
    $region14: #{tpu_custom_call.1} parent=1 // pred_check
      _
    $region15: #{tpu_custom_call.1} parent=1 // pred_check_branch
      %42 = sbr.rel (0) target = $region17
    $region16: #{tpu_custom_call.1} parent=1 // pred_region
      %s44 = ssub.s32 256, 256
      %45 = vsyncadd [#allocation6], %s44
      %s46 = sshll.u32 [#allocation7], 4
      %s47 = int_to_ptr.vmem [resolvable:$true] %s46
      %52 = dma.hbm_to_vmem [thread:$0]  %s3, 256, %s47, [#allocation6], 128, 128, 8
    $region17: #{tpu_custom_call.1} parent=1 // pred_fallthru
      _
    // Predicated region
    $region18: #{tpu_custom_call.1} parent=1 // pred_check
      _
    $region19: #{tpu_custom_call.1} parent=1 // pred_check_branch
      %54 = sbr.rel (0) target = $region21
    $region20: #{tpu_custom_call.1} parent=1 // pred_region
      %s56 = ssub.s32 1024, 1024
      %57 = vsyncadd [#allocation9], %s56
      %s58 = sshll.u32 [#allocation8], 4
      %s59 = int_to_ptr.vmem [resolvable:$true] %s58
      %64 = dma.hbm_to_vmem [thread:$0]  %s4, 1024, %s59, [#allocation9], 64, 64, 4
    $region21: #{tpu_custom_call.1} parent=1 // pred_fallthru
      _
    // Predicated region
    $region22: #{tpu_custom_call.1} parent=1 // pred_check
      _
    $region23: #{tpu_custom_call.1} parent=1 // pred_check_branch
      %66 = sbr.rel (0) target = $region25
    $region24: #{tpu_custom_call.1} parent=1 // pred_region
      _
    $region25: #{tpu_custom_call.1} parent=1 // pred_fallthru
      _
    // Predicated region
    $region26: #{tpu_custom_call.1} parent=1 // pred_check
      _
    $region27: #{tpu_custom_call.1} parent=1 // pred_check_branch
      %68 = sbr.rel (0) target = $region29
    $region28: #{tpu_custom_call.1} parent=1 // pred_region
      %69 = dma.done [#allocation3], 1024
    $region29: #{tpu_custom_call.1} parent=1 // pred_fallthru
      _
    // Predicated region
    $region30: #{tpu_custom_call.1} parent=1 // pred_check
      _
    $region31: #{tpu_custom_call.1} parent=1 // pred_check_branch
      %71 = sbr.rel (0) target = $region33
    $region32: #{tpu_custom_call.1} parent=1 // pred_region
      %72 = dma.done [#allocation6], 5120
    $region33: #{tpu_custom_call.1} parent=1 // pred_fallthru
      _
    // Predicated region
    $region34: #{tpu_custom_call.1} parent=1 // pred_check
      _
    $region35: #{tpu_custom_call.1} parent=1 // pred_check_branch
      %74 = sbr.rel (0) target = $region37
    $region36: #{tpu_custom_call.1} parent=1 // pred_region
      %75 = dma.done [#allocation6], 256
    $region37: #{tpu_custom_call.1} parent=1 // pred_fallthru
      _
    // Predicated region
    $region38: #{tpu_custom_call.1} parent=1 // pred_check
      _
    $region39: #{tpu_custom_call.1} parent=1 // pred_check_branch
      %77 = sbr.rel (0) target = $region41
    $region40: #{tpu_custom_call.1} parent=1 // pred_region
      %78 = dma.done [#allocation9], 1024
    $region41: #{tpu_custom_call.1} parent=1 // pred_fallthru
      _
    %v80 = vld [vmem:[#allocation2] sm:$0xf]
    %v81 = vld [vmem:[#allocation2 + $0x4] sm:$0xf]
    %v82 = vld [vmem:[#allocation2 + $0x8] sm:$0xf]
    %v83 = vld [vmem:[#allocation2 + $0xc] sm:$0xf]
    %v84 = vld [vmem:[#allocation2 + $0x10] sm:$0xf]
    %v85 = vld [vmem:[#allocation2 + $0x14] sm:$0xf]
    %v86 = vld [vmem:[#allocation2 + $0x18] sm:$0xf]
    %v87 = vld [vmem:[#allocation2 + $0x1c] sm:$0xf]
    %v88 = vld [vmem:[#allocation2 + $0x20] sm:$0xf]
    %v89 = vld [vmem:[#allocation2 + $0x24] sm:$0xf]
    %v90 = vld [vmem:[#allocation2 + $0x28] sm:$0xf]
    %v91 = vld [vmem:[#allocation2 + $0x2c] sm:$0xf]
    %v92 = vld [vmem:[#allocation2 + $0x30] sm:$0xf]
    %v93 = vld [vmem:[#allocation2 + $0x34] sm:$0xf]
    %v94 = vld [vmem:[#allocation2 + $0x38] sm:$0xf]
    %v95 = vld [vmem:[#allocation2 + $0x3c] sm:$0xf]
    %v96 = vunpack.c.l.bf16 %v80
    %v97 = vunpack.c.l.bf16 %v81
    %v98 = vunpack.c.l.bf16 %v82
    %v99 = vunpack.c.l.bf16 %v83
    %v100 = vunpack.c.l.bf16 %v84
    %v101 = vunpack.c.l.bf16 %v85
    %v102 = vunpack.c.l.bf16 %v86
    %v103 = vunpack.c.l.bf16 %v87
    %v104 = vunpack.c.l.bf16 %v88
    %v105 = vunpack.c.l.bf16 %v89
    %v106 = vunpack.c.l.bf16 %v90
    %v107 = vunpack.c.l.bf16 %v91
    %v108 = vunpack.c.l.bf16 %v92
    %v109 = vunpack.c.l.bf16 %v93
    %v110 = vunpack.c.l.bf16 %v94
    %v111 = vunpack.c.l.bf16 %v95
    %v112 = vpack.c.bf16 %v97, %v96
    %v113 = vpack.c.bf16 %v99, %v98
    %v114 = vpack.c.bf16 %v101, %v100
    %v115 = vpack.c.bf16 %v103, %v102
    %v116 = vpack.c.bf16 %v105, %v104
    %v117 = vpack.c.bf16 %v107, %v106
    %v118 = vpack.c.bf16 %v109, %v108
    %v119 = vpack.c.bf16 %v111, %v110
    %v120 = vpack.c.bf16 0.0, 0.0
    %v137 = vunpack.c.l.b16 %v80
    %v138 = vunpack.c.l.b16 %v81
    %v139 = vunpack.c.l.b16 %v82
    %v140 = vunpack.c.l.b16 %v83
    %v141 = vunpack.c.l.b16 %v84
    %v142 = vunpack.c.l.b16 %v85
    %v143 = vunpack.c.l.b16 %v86
    %v144 = vunpack.c.l.b16 %v87
    %v145 = vunpack.c.l.b16 %v88
    %v146 = vunpack.c.l.b16 %v89
    %v147 = vunpack.c.l.b16 %v90
    %v148 = vunpack.c.l.b16 %v91
    %v149 = vunpack.c.l.b16 %v92
    %v150 = vunpack.c.l.b16 %v93
    %v151 = vunpack.c.l.b16 %v94
    %v152 = vunpack.c.l.b16 %v95
    %v153 = vpack.c.b16 %v138, %v137
    %v154 = vpack.c.b16 %v140, %v139
    %v155 = vpack.c.b16 %v142, %v141
    %v156 = vpack.c.b16 %v144, %v143
    %v157 = vpack.c.b16 %v146, %v145
    %v158 = vpack.c.b16 %v148, %v147
    %v159 = vpack.c.b16 %v150, %v149
    %v160 = vpack.c.b16 %v152, %v151
    %vm169 = vsmask.f32 7424
    %v171 = vshrl.u32 %v112, 16
    %v173 = vshll.u32 %v112, 16
    %v175 = vrot.slane %v173, 1
    %v176 = vor.u32 %v171, %v175
    %v178 = vshll.u32 %v113, 16
    %v180 = vrot.slane %v178, 1
    %v181 = vsel %vm169, %v176, %v180
    %v182 = vshrl.u32 %v113, 16
    %v184 = vor.u32 %v182, %v180
    %v186 = vshll.u32 %v114, 16
    %v188 = vrot.slane %v186, 1
    %v189 = vsel %vm169, %v184, %v188
    %v190 = vshrl.u32 %v114, 16
    %v192 = vor.u32 %v190, %v188
    %v194 = vshll.u32 %v115, 16
    %v196 = vrot.slane %v194, 1
    %v197 = vsel %vm169, %v192, %v196
    %v198 = vshrl.u32 %v115, 16
    %v200 = vor.u32 %v198, %v196
    %v202 = vshll.u32 %v116, 16
    %v204 = vrot.slane %v202, 1
    %v205 = vsel %vm169, %v200, %v204
    %v206 = vshrl.u32 %v116, 16
    %v208 = vor.u32 %v206, %v204
    %v210 = vshll.u32 %v117, 16
    %v212 = vrot.slane %v210, 1
    %v213 = vsel %vm169, %v208, %v212
    %v214 = vshrl.u32 %v117, 16
    %v216 = vor.u32 %v214, %v212
    %v218 = vshll.u32 %v118, 16
    %v220 = vrot.slane %v218, 1
    %v221 = vsel %vm169, %v216, %v220
    %v222 = vshrl.u32 %v118, 16
    %v224 = vor.u32 %v222, %v220
    %v226 = vshll.u32 %v119, 16
    %v228 = vrot.slane %v226, 1
    %v229 = vsel %vm169, %v224, %v228
    %v230 = vshrl.u32 %v119, 16
    %v232 = vor.u32 %v230, %v228
    %v234 = vshll.u32 %v120, 16
    %v236 = vrot.slane %v234, 1
    %v237 = vsel %vm169, %v232, %v236
    %vm255 = vcmask 1046528
    %v256 = vrot.slane %v112, 1
    %v257 = vrot.slane %v113, 1
    %v258 = vsel %vm255, %v256, %v257
    %v259 = vrot.slane %v114, 1
    %v260 = vsel %vm255, %v257, %v259
    %v261 = vrot.slane %v115, 1
    %v262 = vsel %vm255, %v259, %v261
    %v263 = vrot.slane %v116, 1
    %v264 = vsel %vm255, %v261, %v263
    %v265 = vrot.slane %v117, 1
    %v266 = vsel %vm255, %v263, %v265
    %v267 = vrot.slane %v118, 1
    %v268 = vsel %vm255, %v265, %v267
    %v269 = vrot.slane %v119, 1
    %v270 = vsel %vm255, %v267, %v269
    %v271 = vrot.slane %v120, 1
    %v272 = vsel %vm255, %v269, %v271
    %vm281 = vsmask.f32 6400
    %v282 = vrot.slane %v171, 1
    %v283 = vrot.slane %v173, 2
    %v284 = vor.u32 %v282, %v283
    %v285 = vrot.slane %v182, 1
    %v286 = vrot.slane %v178, 2
    %v287 = vor.u32 %v285, %v286
    %v288 = vsel %vm281, %v284, %v287
    %v289 = vrot.slane %v190, 1
    %v290 = vrot.slane %v186, 2
    %v291 = vor.u32 %v289, %v290
    %v292 = vsel %vm281, %v287, %v291
    %v293 = vrot.slane %v198, 1
    %v294 = vrot.slane %v194, 2
    %v295 = vor.u32 %v293, %v294
    %v296 = vsel %vm281, %v291, %v295
    %v297 = vrot.slane %v206, 1
    %v298 = vrot.slane %v202, 2
    %v299 = vor.u32 %v297, %v298
    %v300 = vsel %vm281, %v295, %v299
    %v301 = vrot.slane %v214, 1
    %v302 = vrot.slane %v210, 2
    %v303 = vor.u32 %v301, %v302
    %v304 = vsel %vm281, %v299, %v303
    %v305 = vrot.slane %v222, 1
    %v306 = vrot.slane %v218, 2
    %v307 = vor.u32 %v305, %v306
    %v308 = vsel %vm281, %v303, %v307
    %v309 = vrot.slane %v230, 1
    %v310 = vrot.slane %v226, 2
    %v311 = vor.u32 %v309, %v310
    %v312 = vsel %vm281, %v307, %v311
    %v313 = vshrl.u32 %v120, 16
    %v315 = vrot.slane %v313, 1
    %v316 = vrot.slane %v234, 2
    %v317 = vor.u32 %v315, %v316
    %v318 = vsel %vm281, %v311, %v317
    %vm327 = vcmask 1045504
    %v328 = vrot.slane %v112, 2
    %v329 = vrot.slane %v113, 2
    %v330 = vsel %vm327, %v328, %v329
    %v331 = vrot.slane %v114, 2
    %v332 = vsel %vm327, %v329, %v331
    %v333 = vrot.slane %v115, 2
    %v334 = vsel %vm327, %v331, %v333
    %v335 = vrot.slane %v116, 2
    %v336 = vsel %vm327, %v333, %v335
    %v337 = vrot.slane %v117, 2
    %v338 = vsel %vm327, %v335, %v337
    %v339 = vrot.slane %v118, 2
    %v340 = vsel %vm327, %v337, %v339
    %v341 = vrot.slane %v119, 2
    %v342 = vsel %vm327, %v339, %v341
    %v343 = vrot.slane %v120, 2
    %v344 = vsel %vm327, %v341, %v343
    %v353 = vld [vmem:[#allocation5] sm:$0xf]
    %v354 = vld [vmem:[#allocation5 + $0x4] sm:$0xf]
    %v355 = vld [vmem:[#allocation5 + $0x8] sm:$0xf]
    %v356 = vld [vmem:[#allocation5 + $0xc] sm:$0xf]
    %v357 = vld [vmem:[#allocation5 + $0x10] sm:$0xf]
    %v358 = vld [vmem:[#allocation5 + $0x14] sm:$0xf]
    %v359 = vld [vmem:[#allocation5 + $0x18] sm:$0xf]
    %v360 = vld [vmem:[#allocation5 + $0x1c] sm:$0xf]
    %v361 = vld [vmem:[#allocation5 + $0x20] sm:$0xf]
    %v362 = vld [vmem:[#allocation5 + $0x24] sm:$0xf]
    %v363 = vld [vmem:[#allocation5 + $0x28] sm:$0xf]
    %v364 = vld [vmem:[#allocation5 + $0x2c] sm:$0xf]
    %v365 = vld [vmem:[#allocation5 + $0x30] sm:$0xf]
    %v366 = vld [vmem:[#allocation5 + $0x34] sm:$0xf]
    %v367 = vld [vmem:[#allocation5 + $0x38] sm:$0xf]
    %v368 = vld [vmem:[#allocation5 + $0x3c] sm:$0xf]
    %v369 = vld [vmem:[#allocation5 + $0x40] sm:$0xf]
    %v370 = vld [vmem:[#allocation5 + $0x44] sm:$0xf]
    %v371 = vld [vmem:[#allocation5 + $0x48] sm:$0xf]
    %v372 = vld [vmem:[#allocation5 + $0x4c] sm:$0xf]
    %v373 = vld [vmem:[#allocation5 + $0x50] sm:$0xf]
    %v374 = vld [vmem:[#allocation5 + $0x54] sm:$0xf]
    %v375 = vld [vmem:[#allocation5 + $0x58] sm:$0xf]
    %v376 = vld [vmem:[#allocation5 + $0x5c] sm:$0xf]
    %v377 = vld [vmem:[#allocation5 + $0x60] sm:$0xf]
    %v378 = vld [vmem:[#allocation5 + $0x64] sm:$0xf]
    %v379 = vld [vmem:[#allocation5 + $0x68] sm:$0xf]
    %v380 = vld [vmem:[#allocation5 + $0x6c] sm:$0xf]
    %v381 = vld [vmem:[#allocation5 + $0x70] sm:$0xf]
    %v382 = vld [vmem:[#allocation5 + $0x74] sm:$0xf]
    %v383 = vld [vmem:[#allocation5 + $0x78] sm:$0xf]
    %v384 = vld [vmem:[#allocation5 + $0x7c] sm:$0xf]
    %v385 = vld [vmem:[#allocation5 + $0x80] sm:$0xf]
    %v386 = vld [vmem:[#allocation5 + $0x84] sm:$0xf]
    %v387 = vld [vmem:[#allocation5 + $0x88] sm:$0xf]
    %v388 = vld [vmem:[#allocation5 + $0x8c] sm:$0xf]
    %v389 = vld [vmem:[#allocation5 + $0x90] sm:$0xf]
    %v390 = vld [vmem:[#allocation5 + $0x94] sm:$0xf]
    %v391 = vld [vmem:[#allocation5 + $0x98] sm:$0xf]
    %v392 = vld [vmem:[#allocation5 + $0x9c] sm:$0xf]
    %v393 = vld [vmem:[#allocation5 + $0xa0] sm:$0xf]
    %v394 = vld [vmem:[#allocation5 + $0xa4] sm:$0xf]
    %v395 = vld [vmem:[#allocation5 + $0xa8] sm:$0xf]
    %v396 = vld [vmem:[#allocation5 + $0xac] sm:$0xf]
    %v397 = vld [vmem:[#allocation5 + $0xb0] sm:$0xf]
    %v398 = vld [vmem:[#allocation5 + $0xb4] sm:$0xf]
    %v399 = vld [vmem:[#allocation5 + $0xb8] sm:$0xf]
    %v400 = vld [vmem:[#allocation5 + $0xbc] sm:$0xf]
    %v401 = vld [vmem:[#allocation5 + $0xc0] sm:$0xf]
    %v402 = vld [vmem:[#allocation5 + $0xc4] sm:$0xf]
    %v403 = vld [vmem:[#allocation5 + $0xc8] sm:$0xf]
    %v404 = vld [vmem:[#allocation5 + $0xcc] sm:$0xf]
    %v405 = vld [vmem:[#allocation5 + $0xd0] sm:$0xf]
    %v406 = vld [vmem:[#allocation5 + $0xd4] sm:$0xf]
    %v407 = vld [vmem:[#allocation5 + $0xd8] sm:$0xf]
    %v408 = vld [vmem:[#allocation5 + $0xdc] sm:$0xf]
    %v409 = vld [vmem:[#allocation5 + $0xe0] sm:$0xf]
    %v410 = vld [vmem:[#allocation5 + $0xe4] sm:$0xf]
    %v411 = vld [vmem:[#allocation5 + $0xe8] sm:$0xf]
    %v412 = vld [vmem:[#allocation5 + $0xec] sm:$0xf]
    %v413 = vld [vmem:[#allocation5 + $0xf0] sm:$0xf]
    %v414 = vld [vmem:[#allocation5 + $0xf4] sm:$0xf]
    %v415 = vld [vmem:[#allocation5 + $0xf8] sm:$0xf]
    %v416 = vld [vmem:[#allocation5 + $0xfc] sm:$0xf]
    %v417 = vld [vmem:[#allocation5 + $0x100] sm:$0xf]
    %v418 = vld [vmem:[#allocation5 + $0x104] sm:$0xf]
    %v419 = vld [vmem:[#allocation5 + $0x108] sm:$0xf]
    %v420 = vld [vmem:[#allocation5 + $0x10c] sm:$0xf]
    %v421 = vld [vmem:[#allocation5 + $0x110] sm:$0xf]
    %v422 = vld [vmem:[#allocation5 + $0x114] sm:$0xf]
    %v423 = vld [vmem:[#allocation5 + $0x118] sm:$0xf]
    %v424 = vld [vmem:[#allocation5 + $0x11c] sm:$0xf]
    %v425 = vld [vmem:[#allocation5 + $0x120] sm:$0xf]
    %v426 = vld [vmem:[#allocation5 + $0x124] sm:$0xf]
    %v427 = vld [vmem:[#allocation5 + $0x128] sm:$0xf]
    %v428 = vld [vmem:[#allocation5 + $0x12c] sm:$0xf]
    %v429 = vld [vmem:[#allocation5 + $0x130] sm:$0xf]
    %v430 = vld [vmem:[#allocation5 + $0x134] sm:$0xf]
    %v431 = vld [vmem:[#allocation5 + $0x138] sm:$0xf]
    %v432 = vld [vmem:[#allocation5 + $0x13c] sm:$0xf]
    %v513 = vunpack.c.l.b16 %v353
    %v514 = vunpack.c.l.b16 %v354
    %v515 = vunpack.c.l.b16 %v355
    %v516 = vunpack.c.l.b16 %v356
    %v517 = vunpack.c.l.b16 %v357
    %v518 = vunpack.c.l.b16 %v358
    %v519 = vunpack.c.l.b16 %v359
    %v520 = vunpack.c.l.b16 %v360
    %v521 = vunpack.c.l.b16 %v361
    %v522 = vunpack.c.l.b16 %v362
    %v523 = vunpack.c.l.b16 %v363
    %v524 = vunpack.c.l.b16 %v364
    %v525 = vunpack.c.l.b16 %v365
    %v526 = vunpack.c.l.b16 %v366
    %v527 = vunpack.c.l.b16 %v367
    %v528 = vunpack.c.l.b16 %v368
    %v529 = vunpack.c.l.b16 %v369
    %v530 = vunpack.c.l.b16 %v370
    %v531 = vunpack.c.l.b16 %v371
    %v532 = vunpack.c.l.b16 %v372
    %v533 = vunpack.c.l.b16 %v373
    %v534 = vunpack.c.l.b16 %v374
    %v535 = vunpack.c.l.b16 %v375
    %v536 = vunpack.c.l.b16 %v376
    %v537 = vunpack.c.l.b16 %v377
    %v538 = vunpack.c.l.b16 %v378
    %v539 = vunpack.c.l.b16 %v379
    %v540 = vunpack.c.l.b16 %v380
    %v541 = vunpack.c.l.b16 %v381
    %v542 = vunpack.c.l.b16 %v382
    %v543 = vunpack.c.l.b16 %v383
    %v544 = vunpack.c.l.b16 %v384
    %v545 = vunpack.c.l.b16 %v385
    %v546 = vunpack.c.l.b16 %v386
    %v547 = vunpack.c.l.b16 %v387
    %v548 = vunpack.c.l.b16 %v388
    %v549 = vunpack.c.l.b16 %v389
    %v550 = vunpack.c.l.b16 %v390
    %v551 = vunpack.c.l.b16 %v391
    %v552 = vunpack.c.l.b16 %v392
    %v553 = vunpack.c.l.b16 %v393
    %v554 = vunpack.c.l.b16 %v394
    %v555 = vunpack.c.l.b16 %v395
    %v556 = vunpack.c.l.b16 %v396
    %v557 = vunpack.c.l.b16 %v397
    %v558 = vunpack.c.l.b16 %v398
    %v559 = vunpack.c.l.b16 %v399
    %v560 = vunpack.c.l.b16 %v400
    %v561 = vunpack.c.l.b16 %v401
    %v562 = vunpack.c.l.b16 %v402
    %v563 = vunpack.c.l.b16 %v403
    %v564 = vunpack.c.l.b16 %v404
    %v565 = vunpack.c.l.b16 %v405
    %v566 = vunpack.c.l.b16 %v406
    %v567 = vunpack.c.l.b16 %v407
    %v568 = vunpack.c.l.b16 %v408
    %v569 = vunpack.c.l.b16 %v409
    %v570 = vunpack.c.l.b16 %v410
    %v571 = vunpack.c.l.b16 %v411
    %v572 = vunpack.c.l.b16 %v412
    %v573 = vunpack.c.l.b16 %v413
    %v574 = vunpack.c.l.b16 %v414
    %v575 = vunpack.c.l.b16 %v415
    %v576 = vunpack.c.l.b16 %v416
    %v577 = vunpack.c.l.b16 %v417
    %v578 = vunpack.c.l.b16 %v418
    %v579 = vunpack.c.l.b16 %v419
    %v580 = vunpack.c.l.b16 %v420
    %v581 = vunpack.c.l.b16 %v421
    %v582 = vunpack.c.l.b16 %v422
    %v583 = vunpack.c.l.b16 %v423
    %v584 = vunpack.c.l.b16 %v424
    %v585 = vunpack.c.l.b16 %v425
    %v586 = vunpack.c.l.b16 %v426
    %v587 = vunpack.c.l.b16 %v427
    %v588 = vunpack.c.l.b16 %v428
    %v589 = vunpack.c.l.b16 %v429
    %v590 = vunpack.c.l.b16 %v430
    %v591 = vunpack.c.l.b16 %v431
    %v592 = vunpack.c.l.b16 %v432
    %v593 = vpack.c.b16 %v514, %v513
    %v594 = vpack.c.b16 %v516, %v515
    %v595 = vpack.c.b16 %v518, %v517
    %v596 = vpack.c.b16 %v520, %v519
    %v597 = vpack.c.b16 %v522, %v521
    %v598 = vpack.c.b16 %v524, %v523
    %v599 = vpack.c.b16 %v526, %v525
    %v600 = vpack.c.b16 %v528, %v527
    %v601 = vpack.c.b16 %v530, %v529
    %v602 = vpack.c.b16 %v532, %v531
    %v603 = vpack.c.b16 %v534, %v533
    %v604 = vpack.c.b16 %v536, %v535
    %v605 = vpack.c.b16 %v538, %v537
    %v606 = vpack.c.b16 %v540, %v539
    %v607 = vpack.c.b16 %v542, %v541
    %v608 = vpack.c.b16 %v544, %v543
    %v609 = vpack.c.b16 %v546, %v545
    %v610 = vpack.c.b16 %v548, %v547
    %v611 = vpack.c.b16 %v550, %v549
    %v612 = vpack.c.b16 %v552, %v551
    %v613 = vpack.c.b16 %v554, %v553
    %v614 = vpack.c.b16 %v556, %v555
    %v615 = vpack.c.b16 %v558, %v557
    %v616 = vpack.c.b16 %v560, %v559
    %v617 = vpack.c.b16 %v562, %v561
    %v618 = vpack.c.b16 %v564, %v563
    %v619 = vpack.c.b16 %v566, %v565
    %v620 = vpack.c.b16 %v568, %v567
    %v621 = vpack.c.b16 %v570, %v569
    %v622 = vpack.c.b16 %v572, %v571
    %v623 = vpack.c.b16 %v574, %v573
    %v624 = vpack.c.b16 %v576, %v575
    %v625 = vpack.c.b16 %v578, %v577
    %v626 = vpack.c.b16 %v580, %v579
    %v627 = vpack.c.b16 %v582, %v581
    %v628 = vpack.c.b16 %v584, %v583
    %v629 = vpack.c.b16 %v586, %v585
    %v630 = vpack.c.b16 %v588, %v587
    %v631 = vpack.c.b16 %v590, %v589
    %v632 = vpack.c.b16 %v592, %v591
    %673 = vmatprep.subr.bf16.mxu0 0
    %674 = vmatpush1.bf16.msra.mxu0 %v600
    %675 = vmatprep.subr.bf16.mxu0 0
    %676 = vmatpush1.bf16.msra.mxu0 %v599
    %677 = vmatprep.subr.bf16.mxu0 0
    %678 = vmatpush1.bf16.msra.mxu0 %v598
    %679 = vmatprep.subr.bf16.mxu0 0
    %680 = vmatpush1.bf16.msra.mxu0 %v597
    %681 = vmatprep.subr.bf16.mxu0 0
    %682 = vmatpush1.bf16.msra.mxu0 %v596
    %683 = vmatprep.subr.bf16.mxu0 0
    %684 = vmatpush1.bf16.msra.mxu0 %v595
    %685 = vmatprep.subr.bf16.mxu0 0
    %686 = vmatpush1.bf16.msra.mxu0 %v594
    %687 = vmatprep.subr.bf16.mxu0 0
    %688 = vmatpush1.bf16.msra.mxu0 %v593
    %689 = vmatprep.subr.bf16.mxu0 0
    %690 = vmatpush2.bf16.msra.mxu0 %v608
    %691 = vmatprep.subr.bf16.mxu0 0
    %692 = vmatpush2.bf16.msra.mxu0 %v607
    %693 = vmatprep.subr.bf16.mxu0 0
    %694 = vmatpush2.bf16.msra.mxu0 %v606
    %695 = vmatprep.subr.bf16.mxu0 0
    %696 = vmatpush2.bf16.msra.mxu0 %v605
    %697 = vmatprep.subr.bf16.mxu0 0
    %698 = vmatpush2.bf16.msra.mxu0 %v604
    %699 = vmatprep.subr.bf16.mxu0 0
    %700 = vmatpush2.bf16.msra.mxu0 %v603
    %701 = vmatprep.subr.bf16.mxu0 0
    %702 = vmatpush2.bf16.msra.mxu0 %v602
    %703 = vmatprep.subr.bf16.mxu0 0
    %704 = vmatpush2.bf16.msra.mxu0 %v601
    %705 = vmatprep.mubr.bf16.mxu0 %v181
    %706 = vmatmul.mubr.bf16.gmra.mxu0 %v153
    %v707 = vpop.f32.mrf.mxu0
    %v708 = vadd.f32 0.0, %v707
    %v709 = vpop.f32.mrf.mxu0
    %v710 = vpop.f32.mrf.mxu0
    %v711 = vadd.f32 0.0, %v710
    %v712 = vpop.f32.mrf.mxu0
    %713 = vmatprep.mubr.bf16.mxu0 %v189
    %714 = vmatmul.mubr.bf16.gmra.mxu0 %v154
    %v715 = vpop.f32.mrf.mxu0
    %v716 = vadd.f32 0.0, %v715
    %v717 = vpop.f32.mrf.mxu0
    %v718 = vpop.f32.mrf.mxu0
    %v719 = vadd.f32 0.0, %v718
    %v720 = vpop.f32.mrf.mxu0
    %721 = vmatprep.mubr.bf16.mxu0 %v197
    %722 = vmatmul.mubr.bf16.gmra.mxu0 %v155
    %v723 = vpop.f32.mrf.mxu0
    %v724 = vadd.f32 0.0, %v723
    %v725 = vpop.f32.mrf.mxu0
    %v726 = vpop.f32.mrf.mxu0
    %v727 = vadd.f32 0.0, %v726
    %v728 = vpop.f32.mrf.mxu0
    %729 = vmatprep.mubr.bf16.mxu0 %v205
    %730 = vmatmul.mubr.bf16.gmra.mxu0 %v156
    %v731 = vpop.f32.mrf.mxu0
    %v732 = vadd.f32 0.0, %v731
    %v733 = vpop.f32.mrf.mxu0
    %v734 = vpop.f32.mrf.mxu0
    %v735 = vadd.f32 0.0, %v734
    %v736 = vpop.f32.mrf.mxu0
    %737 = vmatprep.mubr.bf16.mxu0 %v213
    %738 = vmatmul.mubr.bf16.gmra.mxu0 %v157
    %v739 = vpop.f32.mrf.mxu0
    %v740 = vadd.f32 0.0, %v739
    %v741 = vpop.f32.mrf.mxu0
    %v742 = vpop.f32.mrf.mxu0
    %v743 = vadd.f32 0.0, %v742
    %v744 = vpop.f32.mrf.mxu0
    %745 = vmatprep.mubr.bf16.mxu0 %v221
    %746 = vmatmul.mubr.bf16.gmra.mxu0 %v158
    %v747 = vpop.f32.mrf.mxu0
    %v748 = vadd.f32 0.0, %v747
    %v749 = vpop.f32.mrf.mxu0
    %v750 = vpop.f32.mrf.mxu0
    %v751 = vadd.f32 0.0, %v750
    %v752 = vpop.f32.mrf.mxu0
    %753 = vmatprep.mubr.bf16.mxu0 %v229
    %754 = vmatmul.mubr.bf16.gmra.mxu0 %v159
    %v755 = vpop.f32.mrf.mxu0
    %v756 = vadd.f32 0.0, %v755
    %v757 = vpop.f32.mrf.mxu0
    %v758 = vpop.f32.mrf.mxu0
    %v759 = vadd.f32 0.0, %v758
    %v760 = vpop.f32.mrf.mxu0
    %761 = vmatprep.mubr.bf16.mxu0 %v237
    %762 = vmatmul.mubr.bf16.gmra.mxu0 %v160
    %v763 = vpop.f32.mrf.mxu0
    %v764 = vadd.f32 0.0, %v763
    %v765 = vpop.f32.mrf.mxu0
    %v766 = vpop.f32.mrf.mxu0
    %v767 = vadd.f32 0.0, %v766
    %v768 = vpop.f32.mrf.mxu0
    %769 = vdwg.mxu0
    %770 = vmatprep.subr.bf16.mxu0 0
    %771 = vmatpush1.bf16.msra.mxu0 %v616
    %772 = vmatprep.subr.bf16.mxu0 0
    %773 = vmatpush1.bf16.msra.mxu0 %v615
    %774 = vmatprep.subr.bf16.mxu0 0
    %775 = vmatpush1.bf16.msra.mxu0 %v614
    %776 = vmatprep.subr.bf16.mxu0 0
    %777 = vmatpush1.bf16.msra.mxu0 %v613
    %778 = vmatprep.subr.bf16.mxu0 0
    %779 = vmatpush1.bf16.msra.mxu0 %v612
    %780 = vmatprep.subr.bf16.mxu0 0
    %781 = vmatpush1.bf16.msra.mxu0 %v611
    %782 = vmatprep.subr.bf16.mxu0 0
    %783 = vmatpush1.bf16.msra.mxu0 %v610
    %784 = vmatprep.subr.bf16.mxu0 0
    %785 = vmatpush1.bf16.msra.mxu0 %v609
    %786 = vmatprep.subr.bf16.mxu0 0
    %787 = vmatpush2.bf16.msra.mxu0 %v624
    %788 = vmatprep.subr.bf16.mxu0 0
    %789 = vmatpush2.bf16.msra.mxu0 %v623
    %790 = vmatprep.subr.bf16.mxu0 0
    %791 = vmatpush2.bf16.msra.mxu0 %v622
    %792 = vmatprep.subr.bf16.mxu0 0
    %793 = vmatpush2.bf16.msra.mxu0 %v621
    %794 = vmatprep.subr.bf16.mxu0 0
    %795 = vmatpush2.bf16.msra.mxu0 %v620
    %796 = vmatprep.subr.bf16.mxu0 0
    %797 = vmatpush2.bf16.msra.mxu0 %v619
    %798 = vmatprep.subr.bf16.mxu0 0
    %799 = vmatpush2.bf16.msra.mxu0 %v618
    %800 = vmatprep.subr.bf16.mxu0 0
    %801 = vmatpush2.bf16.msra.mxu0 %v617
    %802 = vmatprep.mubr.bf16.mxu0 %v288
    %803 = vmatmul.mubr.bf16.gmra.mxu0 %v258
    %v804 = vpop.f32.mrf.mxu0
    %v805 = vadd.f32 %v708, %v804
    %v806 = vpop.f32.mrf.mxu0
    %v807 = vpop.f32.mrf.mxu0
    %v808 = vadd.f32 %v711, %v807
    %v809 = vpop.f32.mrf.mxu0
    %810 = vmatprep.mubr.bf16.mxu0 %v292
    %811 = vmatmul.mubr.bf16.gmra.mxu0 %v260
    %v812 = vpop.f32.mrf.mxu0
    %v813 = vadd.f32 %v716, %v812
    %v814 = vpop.f32.mrf.mxu0
    %v815 = vpop.f32.mrf.mxu0
    %v816 = vadd.f32 %v719, %v815
    %v817 = vpop.f32.mrf.mxu0
    %818 = vmatprep.mubr.bf16.mxu0 %v296
    %819 = vmatmul.mubr.bf16.gmra.mxu0 %v262
    %v820 = vpop.f32.mrf.mxu0
    %v821 = vadd.f32 %v724, %v820
    %v822 = vpop.f32.mrf.mxu0
    %v823 = vpop.f32.mrf.mxu0
    %v824 = vadd.f32 %v727, %v823
    %v825 = vpop.f32.mrf.mxu0
    %826 = vmatprep.mubr.bf16.mxu0 %v300
    %827 = vmatmul.mubr.bf16.gmra.mxu0 %v264
    %v828 = vpop.f32.mrf.mxu0
    %v829 = vadd.f32 %v732, %v828
    %v830 = vpop.f32.mrf.mxu0
    %v831 = vpop.f32.mrf.mxu0
    %v832 = vadd.f32 %v735, %v831
    %v833 = vpop.f32.mrf.mxu0
    %834 = vmatprep.mubr.bf16.mxu0 %v304
    %835 = vmatmul.mubr.bf16.gmra.mxu0 %v266
    %v836 = vpop.f32.mrf.mxu0
    %v837 = vadd.f32 %v740, %v836
    %v838 = vpop.f32.mrf.mxu0
    %v839 = vpop.f32.mrf.mxu0
    %v840 = vadd.f32 %v743, %v839
    %v841 = vpop.f32.mrf.mxu0
    %842 = vmatprep.mubr.bf16.mxu0 %v308
    %843 = vmatmul.mubr.bf16.gmra.mxu0 %v268
    %v844 = vpop.f32.mrf.mxu0
    %v845 = vadd.f32 %v748, %v844
    %v846 = vpop.f32.mrf.mxu0
    %v847 = vpop.f32.mrf.mxu0
    %v848 = vadd.f32 %v751, %v847
    %v849 = vpop.f32.mrf.mxu0
    %850 = vmatprep.mubr.bf16.mxu0 %v312
    %851 = vmatmul.mubr.bf16.gmra.mxu0 %v270
    %v852 = vpop.f32.mrf.mxu0
    %v853 = vadd.f32 %v756, %v852
    %v854 = vpop.f32.mrf.mxu0
    %v855 = vpop.f32.mrf.mxu0
    %v856 = vadd.f32 %v759, %v855
    %v857 = vpop.f32.mrf.mxu0
    %858 = vmatprep.mubr.bf16.mxu0 %v318
    %859 = vmatmul.mubr.bf16.gmra.mxu0 %v272
    %v860 = vpop.f32.mrf.mxu0
    %v861 = vadd.f32 %v764, %v860
    %v862 = vpop.f32.mrf.mxu0
    %v863 = vpop.f32.mrf.mxu0
    %v864 = vadd.f32 %v767, %v863
    %v865 = vpop.f32.mrf.mxu0
    %866 = vdwg.mxu0
    %867 = vmatprep.subr.bf16.mxu0 0
    %868 = vmatpush1.bf16.msra.mxu0 %v632
    %869 = vmatprep.subr.bf16.mxu0 0
    %870 = vmatpush1.bf16.msra.mxu0 %v631
    %871 = vmatprep.subr.bf16.mxu0 0
    %872 = vmatpush1.bf16.msra.mxu0 %v630
    %873 = vmatprep.subr.bf16.mxu0 0
    %874 = vmatpush1.bf16.msra.mxu0 %v629
    %875 = vmatprep.subr.bf16.mxu0 0
    %876 = vmatpush1.bf16.msra.mxu0 %v628
    %877 = vmatprep.subr.bf16.mxu0 0
    %878 = vmatpush1.bf16.msra.mxu0 %v627
    %879 = vmatprep.subr.bf16.mxu0 0
    %880 = vmatpush1.bf16.msra.mxu0 %v626
    %881 = vmatprep.subr.bf16.mxu0 0
    %882 = vmatpush1.bf16.msra.mxu0 %v625
    %883 = vmatprep.subr.bf16.mxu0 0
    %884 = vmatpush2.bf16.msra.mxu0 0
    %885 = vmatprep.subr.bf16.mxu0 0
    %886 = vmatpush2.bf16.msra.mxu0 0
    %887 = vmatprep.subr.bf16.mxu0 0
    %888 = vmatpush2.bf16.msra.mxu0 0
    %889 = vmatprep.subr.bf16.mxu0 0
    %890 = vmatpush2.bf16.msra.mxu0 0
    %891 = vmatprep.subr.bf16.mxu0 0
    %892 = vmatpush2.bf16.msra.mxu0 0
    %893 = vmatprep.subr.bf16.mxu0 0
    %894 = vmatpush2.bf16.msra.mxu0 0
    %895 = vmatprep.subr.bf16.mxu0 0
    %896 = vmatpush2.bf16.msra.mxu0 0
    %897 = vmatprep.subr.bf16.mxu0 0
    %898 = vmatpush2.bf16.msra.mxu0 0
    %899 = vmatprep.mubr.bf16.mxu0 0
    %900 = vmatmul.mubr.bf16.gmra.mxu0 %v330
    %v901 = vpop.f32.mrf.mxu0
    %v902 = vadd.f32 %v805, %v901
    %v903 = vpop.f32.mrf.mxu0
    %v904 = vpop.f32.mrf.mxu0
    %v905 = vadd.f32 %v808, %v904
    %v906 = vpop.f32.mrf.mxu0
    %907 = vmatprep.mubr.bf16.mxu0 0
    %908 = vmatmul.mubr.bf16.gmra.mxu0 %v332
    %v909 = vpop.f32.mrf.mxu0
    %v910 = vadd.f32 %v813, %v909
    %v911 = vpop.f32.mrf.mxu0
    %v912 = vpop.f32.mrf.mxu0
    %v913 = vadd.f32 %v816, %v912
    %v914 = vpop.f32.mrf.mxu0
    %915 = vmatprep.mubr.bf16.mxu0 0
    %916 = vmatmul.mubr.bf16.gmra.mxu0 %v334
    %v917 = vpop.f32.mrf.mxu0
    %v918 = vadd.f32 %v821, %v917
    %v919 = vpop.f32.mrf.mxu0
    %v920 = vpop.f32.mrf.mxu0
    %v921 = vadd.f32 %v824, %v920
    %v922 = vpop.f32.mrf.mxu0
    %923 = vmatprep.mubr.bf16.mxu0 0
    %924 = vmatmul.mubr.bf16.gmra.mxu0 %v336
    %v925 = vpop.f32.mrf.mxu0
    %v926 = vadd.f32 %v829, %v925
    %v927 = vpop.f32.mrf.mxu0
    %v928 = vpop.f32.mrf.mxu0
    %v929 = vadd.f32 %v832, %v928
    %v930 = vpop.f32.mrf.mxu0
    %931 = vmatprep.mubr.bf16.mxu0 0
    %932 = vmatmul.mubr.bf16.gmra.mxu0 %v338
    %v933 = vpop.f32.mrf.mxu0
    %v934 = vadd.f32 %v837, %v933
    %v935 = vpop.f32.mrf.mxu0
    %v936 = vpop.f32.mrf.mxu0
    %v937 = vadd.f32 %v840, %v936
    %v938 = vpop.f32.mrf.mxu0
    %939 = vmatprep.mubr.bf16.mxu0 0
    %940 = vmatmul.mubr.bf16.gmra.mxu0 %v340
    %v941 = vpop.f32.mrf.mxu0
    %v942 = vadd.f32 %v845, %v941
    %v943 = vpop.f32.mrf.mxu0
    %v944 = vpop.f32.mrf.mxu0
    %v945 = vadd.f32 %v848, %v944
    %v946 = vpop.f32.mrf.mxu0
    %947 = vmatprep.mubr.bf16.mxu0 0
    %948 = vmatmul.mubr.bf16.gmra.mxu0 %v342
    %v949 = vpop.f32.mrf.mxu0
    %v950 = vadd.f32 %v853, %v949
    %v951 = vpop.f32.mrf.mxu0
    %v952 = vpop.f32.mrf.mxu0
    %v953 = vadd.f32 %v856, %v952
    %v954 = vpop.f32.mrf.mxu0
    %955 = vmatprep.mubr.bf16.mxu0 0
    %956 = vmatmul.mubr.bf16.gmra.mxu0 %v344
    %v957 = vpop.f32.mrf.mxu0
    %v958 = vadd.f32 %v861, %v957
    %v959 = vpop.f32.mrf.mxu0
    %v960 = vpop.f32.mrf.mxu0
    %v961 = vadd.f32 %v864, %v960
    %v962 = vpop.f32.mrf.mxu0
    %963 = vdwg.mxu0
    %v964 = vld [vmem:[#allocation7] sm:$0xff]
    %v965 = vld [vmem:[#allocation7 + $0x8] sm:$0xff]
    %v966 = vadd.f32 %v902, %v964
    %v967 = vadd.f32 %v905, %v965
    %v968 = vadd.f32 %v910, %v964
    %v969 = vadd.f32 %v913, %v965
    %v970 = vadd.f32 %v918, %v964
    %v971 = vadd.f32 %v921, %v965
    %v972 = vadd.f32 %v926, %v964
    %v973 = vadd.f32 %v929, %v965
    %v974 = vadd.f32 %v934, %v964
    %v975 = vadd.f32 %v937, %v965
    %v976 = vadd.f32 %v942, %v964
    %v977 = vadd.f32 %v945, %v965
    %v978 = vadd.f32 %v950, %v964
    %v979 = vadd.f32 %v953, %v965
    %v980 = vadd.f32 %v958, %v964
    %v981 = vadd.f32 %v961, %v965
    %v982 = vmax.f32 %v966, %v967
    %v983 = vrot.slane %v982, 4
    %v984 = vmax.f32 %v982, %v983
    %v985 = vrot.slane %v984, 2
    %v986 = vmax.f32 %v984, %v985
    %v987 = vrot.slane %v986, 1
    %v988 = vmax.f32 %v986, %v987
    %v989 = vmax.f32 %v968, %v969
    %v990 = vrot.slane %v989, 4
    %v991 = vmax.f32 %v989, %v990
    %v992 = vrot.slane %v991, 2
    %v993 = vmax.f32 %v991, %v992
    %v994 = vrot.slane %v993, 1
    %v995 = vmax.f32 %v993, %v994
    %v996 = vmax.f32 %v970, %v971
    %v997 = vrot.slane %v996, 4
    %v998 = vmax.f32 %v996, %v997
    %v999 = vrot.slane %v998, 2
    %v1000 = vmax.f32 %v998, %v999
    %v1001 = vrot.slane %v1000, 1
    %v1002 = vmax.f32 %v1000, %v1001
    %v1003 = vmax.f32 %v972, %v973
    %v1004 = vrot.slane %v1003, 4
    %v1005 = vmax.f32 %v1003, %v1004
    %v1006 = vrot.slane %v1005, 2
    %v1007 = vmax.f32 %v1005, %v1006
    %v1008 = vrot.slane %v1007, 1
    %v1009 = vmax.f32 %v1007, %v1008
    %v1010 = vmax.f32 %v974, %v975
    %v1011 = vrot.slane %v1010, 4
    %v1012 = vmax.f32 %v1010, %v1011
    %v1013 = vrot.slane %v1012, 2
    %v1014 = vmax.f32 %v1012, %v1013
    %v1015 = vrot.slane %v1014, 1
    %v1016 = vmax.f32 %v1014, %v1015
    %v1017 = vmax.f32 %v976, %v977
    %v1018 = vrot.slane %v1017, 4
    %v1019 = vmax.f32 %v1017, %v1018
    %v1020 = vrot.slane %v1019, 2
    %v1021 = vmax.f32 %v1019, %v1020
    %v1022 = vrot.slane %v1021, 1
    %v1023 = vmax.f32 %v1021, %v1022
    %v1024 = vmax.f32 %v978, %v979
    %v1025 = vrot.slane %v1024, 4
    %v1026 = vmax.f32 %v1024, %v1025
    %v1027 = vrot.slane %v1026, 2
    %v1028 = vmax.f32 %v1026, %v1027
    %v1029 = vrot.slane %v1028, 1
    %v1030 = vmax.f32 %v1028, %v1029
    %v1031 = vmax.f32 %v980, %v981
    %v1032 = vrot.slane %v1031, 4
    %v1033 = vmax.f32 %v1031, %v1032
    %v1034 = vrot.slane %v1033, 2
    %v1035 = vmax.f32 %v1033, %v1034
    %v1036 = vrot.slane %v1035, 1
    %v1037 = vmax.f32 %v1035, %v1036
    %v1038 = vld [vmem:[%s2] sm:$0x1]
    %v1040 = vlaneseq
    %v1041 = vshrl.u32 %v1040, 7
    %v1042 = vsub.s32 0, %v1041
    %v1043 = vrot.slane %v1038, %v1042
    %v1045 = vadd.f32 %v988, %v1043
    %v1046 = vadd.f32 %v995, %v1043
    %v1047 = vadd.f32 %v1002, %v1043
    %v1048 = vadd.f32 %v1009, %v1043
    %v1049 = vadd.f32 %v1016, %v1043
    %v1050 = vadd.f32 %v1023, %v1043
    %v1051 = vadd.f32 %v1030, %v1043
    %v1052 = vadd.f32 %v1037, %v1043
    %v1053 = vmax.f32 %v1045, 0.0
    %v1054 = vmax.f32 %v1046, 0.0
    %v1055 = vmax.f32 %v1047, 0.0
    %v1056 = vmax.f32 %v1048, 0.0
    %v1057 = vmax.f32 %v1049, 0.0
    %v1058 = vmax.f32 %v1050, 0.0
    %v1059 = vmax.f32 %v1051, 0.0
    %v1060 = vmax.f32 %v1052, 0.0
    %v1061 = vpack.c.bf16 %v1053, %v1053
    %v1062 = vpack.c.bf16 %v1054, %v1054
    %v1063 = vpack.c.bf16 %v1055, %v1055
    %v1064 = vpack.c.bf16 %v1056, %v1056
    %v1065 = vpack.c.bf16 %v1057, %v1057
    %v1066 = vpack.c.bf16 %v1058, %v1058
    %v1067 = vpack.c.bf16 %v1059, %v1059
    %v1068 = vpack.c.bf16 %v1060, %v1060
    %v1069 = vld [vmem:[#allocation8] sm:$0xf]
    %v1070 = vld [vmem:[#allocation8 + $0x4] sm:$0xf]
    %v1071 = vld [vmem:[#allocation8 + $0x8] sm:$0xf]
    %v1072 = vld [vmem:[#allocation8 + $0xc] sm:$0xf]
    %v1073 = vld [vmem:[#allocation8 + $0x10] sm:$0xf]
    %v1074 = vld [vmem:[#allocation8 + $0x14] sm:$0xf]
    %v1075 = vld [vmem:[#allocation8 + $0x18] sm:$0xf]
    %v1076 = vld [vmem:[#allocation8 + $0x1c] sm:$0xf]
    %v1077 = vld [vmem:[#allocation8 + $0x20] sm:$0xf]
    %v1078 = vld [vmem:[#allocation8 + $0x24] sm:$0xf]
    %v1079 = vld [vmem:[#allocation8 + $0x28] sm:$0xf]
    %v1080 = vld [vmem:[#allocation8 + $0x2c] sm:$0xf]
    %v1081 = vld [vmem:[#allocation8 + $0x30] sm:$0xf]
    %v1082 = vld [vmem:[#allocation8 + $0x34] sm:$0xf]
    %v1083 = vld [vmem:[#allocation8 + $0x38] sm:$0xf]
    %v1084 = vld [vmem:[#allocation8 + $0x3c] sm:$0xf]
    %v1085 = vld [vmem:[%s5] sm:$0x1]
    %v1087 = vlaneseq
    %v1088 = vshrl.u32 %v1087, 7
    %v1089 = vsub.s32 0, %v1088
    %v1090 = vrot.slane %v1085, %v1089
    %v1100 = vunpack.c.l.b16 %v1061
    %v1101 = vunpack.c.l.b16 %v1062
    %v1102 = vunpack.c.l.b16 %v1063
    %v1103 = vunpack.c.l.b16 %v1064
    %v1104 = vunpack.c.l.b16 %v1065
    %v1105 = vunpack.c.l.b16 %v1066
    %v1106 = vunpack.c.l.b16 %v1067
    %v1107 = vunpack.c.l.b16 %v1068
    %v1108 = vrot.slane %v1101, 7
    %vm1109 = vcmask 1041409
    %v1110 = vsel %vm1109, %v1108, %v1100
    %v1111 = vrot.slane %v1102, 6
    %vm1112 = vcmask 1042434
    %v1113 = vsel %vm1112, %v1111, %v1110
    %v1114 = vrot.slane %v1103, 5
    %vm1115 = vcmask 1043459
    %v1116 = vsel %vm1115, %v1114, %v1113
    %v1117 = vrot.slane %v1104, 4
    %vm1118 = vcmask 1044484
    %v1119 = vsel %vm1118, %v1117, %v1116
    %v1120 = vrot.slane %v1105, 3
    %vm1121 = vcmask 1045509
    %v1122 = vsel %vm1121, %v1120, %v1119
    %v1123 = vrot.slane %v1106, 2
    %vm1124 = vcmask 1046534
    %v1125 = vsel %vm1124, %v1123, %v1122
    %v1126 = vrot.slane %v1107, 1
    %vm1127 = vcmask 1047559
    %v1128 = vsel %vm1127, %v1126, %v1125
    %v1129 = vpack.c.b16 %v1128, %v1128
    %v1147 = vunpack.c.l.b16 %v1069
    %v1148 = vunpack.c.l.b16 %v1070
    %v1149 = vunpack.c.l.b16 %v1071
    %v1150 = vunpack.c.l.b16 %v1072
    %v1151 = vunpack.c.l.b16 %v1073
    %v1152 = vunpack.c.l.b16 %v1074
    %v1153 = vunpack.c.l.b16 %v1075
    %v1154 = vunpack.c.l.b16 %v1076
    %v1155 = vunpack.c.l.b16 %v1077
    %v1156 = vunpack.c.l.b16 %v1078
    %v1157 = vunpack.c.l.b16 %v1079
    %v1158 = vunpack.c.l.b16 %v1080
    %v1159 = vunpack.c.l.b16 %v1081
    %v1160 = vunpack.c.l.b16 %v1082
    %v1161 = vunpack.c.l.b16 %v1083
    %v1162 = vunpack.c.l.b16 %v1084
    %v1163 = vpack.c.b16 %v1148, %v1147
    %v1164 = vpack.c.b16 %v1150, %v1149
    %v1165 = vpack.c.b16 %v1152, %v1151
    %v1166 = vpack.c.b16 %v1154, %v1153
    %v1167 = vpack.c.b16 %v1156, %v1155
    %v1168 = vpack.c.b16 %v1158, %v1157
    %v1169 = vpack.c.b16 %v1160, %v1159
    %v1170 = vpack.c.b16 %v1162, %v1161
    %1179 = vmatprep.subr.bf16.mxu0 0
    %1180 = vmatpush1.bf16.msra.mxu0 %v1170
    %1181 = vmatprep.subr.bf16.mxu0 0
    %1182 = vmatpush1.bf16.msra.mxu0 %v1169
    %1183 = vmatprep.subr.bf16.mxu0 0
    %1184 = vmatpush1.bf16.msra.mxu0 %v1168
    %1185 = vmatprep.subr.bf16.mxu0 0
    %1186 = vmatpush1.bf16.msra.mxu0 %v1167
    %1187 = vmatprep.subr.bf16.mxu0 0
    %1188 = vmatpush1.bf16.msra.mxu0 %v1166
    %1189 = vmatprep.subr.bf16.mxu0 0
    %1190 = vmatpush1.bf16.msra.mxu0 %v1165
    %1191 = vmatprep.subr.bf16.mxu0 0
    %1192 = vmatpush1.bf16.msra.mxu0 %v1164
    %1193 = vmatprep.subr.bf16.mxu0 0
    %1194 = vmatpush1.bf16.msra.mxu0 %v1163
    %1195 = vmatprep.subr.bf16.mxu0 0
    %1196 = vmatpush2.bf16.msra.mxu0 0
    %1197 = vmatprep.subr.bf16.mxu0 0
    %1198 = vmatpush2.bf16.msra.mxu0 0
    %1199 = vmatprep.subr.bf16.mxu0 0
    %1200 = vmatpush2.bf16.msra.mxu0 0
    %1201 = vmatprep.subr.bf16.mxu0 0
    %1202 = vmatpush2.bf16.msra.mxu0 0
    %1203 = vmatprep.subr.bf16.mxu0 0
    %1204 = vmatpush2.bf16.msra.mxu0 0
    %1205 = vmatprep.subr.bf16.mxu0 0
    %1206 = vmatpush2.bf16.msra.mxu0 0
    %1207 = vmatprep.subr.bf16.mxu0 0
    %1208 = vmatpush2.bf16.msra.mxu0 0
    %1209 = vmatprep.subr.bf16.mxu0 0
    %1210 = vmatpush2.bf16.msra.mxu0 0
    %1211 = vmatprep.mubr.bf16.mxu0 0
    %1212 = vmatmul.mubr.bf16.gmra.mxu0 %v1129
    %v1213 = vpop.f32.mrf.mxu0
    %v1214 = vadd.f32 %v1090, %v1213
    %v1215 = vpop.f32.mrf.mxu0
    %v1216 = vpop.f32.mrf.mxu0
    %v1217 = vpop.f32.mrf.mxu0
    %1218 = vdwg.mxu0
    %1219 = vst [vmem:[#allocation10] sm:$0xff] %v1214
    // Predicated region
    $region42: #{tpu_custom_call.1} parent=1 // pred_check
      _
    $region43: #{tpu_custom_call.1} parent=1 // pred_check_branch
      %1221 = sbr.rel (0) target = $region45
    $region44: #{tpu_custom_call.1} parent=1 // pred_region
      %s1223 = ssub.s32 128, 128
      %1224 = vsyncadd [#allocation4], %s1223
      %s1226 = sshll.u32 [#allocation10], 4
      %s1227 = int_to_ptr.vmem [resolvable:$true] %s1226
      %1229 = dma.vmem_to_hbm [thread:$0]  %s1227, 128, %s6, [#allocation4]
    $region45: #{tpu_custom_call.1} parent=1 // pred_fallthru
      _
    // Predicated region
    $region46: #{tpu_custom_call.1} parent=1 // pred_check
      _
    $region47: #{tpu_custom_call.1} parent=1 // pred_check_branch
      %1231 = sbr.rel (0) target = $region49
    $region48: #{tpu_custom_call.1} parent=1 // pred_region
      %1232 = dma.done [#allocation4], 128
    $region49: #{tpu_custom_call.1} parent=1 // pred_fallthru
      _
    %1233 = vsyncpa [#allocation3], 1
    %1234 = vsyncpa [#allocation6], 1
    %1235 = vsyncpa [#allocation9], 1
    %1236 = vsyncpa [#allocation4], 1

</llo_original>
